<compile_context>
chip_gen: v7x
topology: tpu7x:2x2x1
jax: 0.10.0
libtpu: 0.0.40
codegen_flags: <defaults>
</compile_context>

<pallas_src>
import functools

import jax
import jax.numpy as jnp
from jax.experimental import pallas as pl
from jax.experimental.pallas import tpu as pltpu


# --------------------------------------------------------------------------------------
# Generation-aware budgets and tiling helpers
# --------------------------------------------------------------------------------------
def _budgets():
    """Returns (per-block byte budget, vmem_limit_bytes) for the local TPU generation."""
    kind = ""
    try:
        kind = jax.devices()[0].device_kind.lower()
    except Exception:
        pass
    if "v7" in kind:
        return 3 << 20, 24 << 20          # 64 MiB physical VMEM per core
    if "v6" in kind or "trillium" in kind:
        return 8 << 20, 64 << 20          # 128 MiB physical VMEM
    if "v5 lite" in kind or "v5lite" in kind or "v5e" in kind:
        return 3 << 20, 32 << 20          # raise the 16 MiB default scoped limit
    return 4 << 20, 32 << 20              # conservative default, safe on any gen


def _largest_tile(n, unit, cap):
    """Largest multiple of `unit` that divides n and is <= cap.
    Falls back to the full extent n when n is not a multiple of `unit`
    (allowed: block dim == full array dim)."""
    if n % unit != 0:
        return n
    cap = max(unit, min(cap, n))
    best = unit
    t = unit
    while t <= cap:
        if n % t == 0:
            best = t
        t += unit
    return best


def _pick_row_tile(rows, max_rows=512):
    """Multiple-of-8 row tile; exposes >= 2 parallel row blocks when possible (megacore)."""
    cap = max_rows
    if rows >= 16:
        cap = min(cap, max(8, (rows // 2) // 8 * 8))
    return _largest_tile(rows, 8, cap)


# --------------------------------------------------------------------------------------
# Kernel 1: adaptive average pool to 1x1 (spatial SUM; 1/HW is folded into the MLP).
# x viewed as (B*C, HW_pad); grid (n_row_tiles, n_hw_tiles); accumulator (row_tile, 1).
# --------------------------------------------------------------------------------------
def _pool_kernel(x_ref, o_ref):
    @pl.when(pl.program_id(1) == 0)
    def _():
        o_ref[...] = jnp.zeros_like(o_ref)

    # Lane reduction of the (row_tile, hw_tile) block -> (row_tile, 1): channels stay on
    # sublanes, result lands in the accumulator's natural layout (no relayout per step).
    o_ref[...] += jnp.sum(x_ref[...].astype(jnp.float32), axis=-1, keepdims=True)


def adaptive_avg_pool_sum(x, hw_tile=None):
    """Per-(batch, channel) spatial SUM as (B, C) float32."""
    B, C, H, W = x.shape
    R, HW = B * C, H * W
    budget, vmem_limit = _budgets()
    itemsize = jnp.dtype(x.dtype).itemsize

    x2 = x.reshape(R, HW)                              # free reshape (NCHW-contiguous)
    HW_pad = pl.cdiv(HW, 128) * 128
    if HW_pad != HW:
        # Zero-pad to a lane-dense multiple of 128 (zeros don't change the sum).
        x2 = jnp.pad(x2, ((0, 0), (0, HW_pad - HW)))

    row_tile = _pick_row_tile(R)
    tile = hw_tile or _largest_tile(HW_pad, 128, budget // (row_tile * itemsize))
    assert HW_pad % tile == 0 and R % row_tile == 0

    pooled = pl.pallas_call(
        _pool_kernel,
        grid=(R // row_tile, HW_pad // tile),
        in_specs=[pl.BlockSpec((row_tile, tile), lambda r, t: (r, t))],
        out_specs=pl.BlockSpec((row_tile, 1), lambda r, t: (r, 0)),
        out_shape=jax.ShapeDtypeStruct((R, 1), jnp.float32),
        compiler_params=pltpu.CompilerParams(
            dimension_semantics=("parallel", "arbitrary"),
            vmem_limit_bytes=vmem_limit),
    )(x2)
    return pooled.reshape(B, C)


# --------------------------------------------------------------------------------------
# Kernel 2: gating MLP  --  pooled sums (B, C) -> att (B, C)
# (scale by 1/HW) then [Linear -> BatchNorm1d(train-mode batch stats) -> ReLU] x3, Linear.
# All operands are a few KB -> one un-tiled invocation.
# --------------------------------------------------------------------------------------
def _mlp_kernel(p_ref, w0, b0, g0, be0, w1, b1, g1, be1, w2, b2, g2, be2, w3, b3,
                o_ref, *, inv_hw):
    def fc_bn_relu(h, w, b, g, be):
        y = jnp.dot(h, w[...], preferred_element_type=jnp.float32) + b[...]
        # BatchNorm1d training-mode forward: batch statistics, biased variance, eps=1e-5.
        mu = jnp.mean(y, axis=0, keepdims=True)
        var = jnp.mean((y - mu) ** 2, axis=0, keepdims=True)
        return jnp.maximum((y - mu) * jax.lax.rsqrt(var + 1e-5) * g[...] + be[...], 0.0)

    h = p_ref[...] * inv_hw          # 1/HW folded here: pool kernel needs no finalize
    h = fc_bn_relu(h, w0, b0, g0, be0)
    h = fc_bn_relu(h, w1, b1, g1, be1)
    h = fc_bn_relu(h, w2, b2, g2, be2)
    o_ref[...] = jnp.dot(h, w3[...], preferred_element_type=jnp.float32) + b3[...]


def ca_mlp(pooled_sum, p, hw):
    B, C = pooled_sum.shape
    return pl.pallas_call(
        functools.partial(_mlp_kernel, inv_hw=1.0 / hw),
        out_shape=jax.ShapeDtypeStruct((B, C), jnp.float32),
    )(pooled_sum,
      p["w0"], p["b0"], p["g0"], p["be0"],
      p["w1"], p["b1"], p["g1"], p["be1"],
      p["w2"], p["b2"], p["g2"], p["be2"],
      p["w3"], p["b3"])


# --------------------------------------------------------------------------------------
# Kernel 3: expand_as  --  att (B, C) broadcast to (B, C, H, W), lane-dense stores in
# x.dtype.  att fed as (B*C, 1) so the broadcast is a native lane broadcast.
# --------------------------------------------------------------------------------------
def _expand_kernel(a_ref, o_ref):
    o_ref[...] = jnp.broadcast_to(a_ref[...].astype(o_ref.dtype), o_ref.shape)


def expand_attention(att, H, W, out_dtype, hw_tile=None):
    B, C = att.shape
    R, HW = B * C, H * W
    budget, vmem_limit = _budgets()
    itemsize = jnp.dtype(out_dtype).itemsize

    att2 = att.reshape(R, 1)                           # free reshape in the wrapper
    row_tile = _pick_row_tile(R)
    if HW % 128 == 0:
        tile = hw_tile or _largest_tile(HW, 128, budget // (row_tile * itemsize))
    else:
        # Rare non-128-divisible spatial size: full-extent last dim (masked stores),
        # row tile re-capped so one output block still fits the budget.
        tile = HW
        row_tile = _largest_tile(R, 8, min(row_tile, max(8, budget // (HW * itemsize))))
    assert HW % tile == 0 and R % row_tile == 0

    out = pl.pallas_call(
        _expand_kernel,
        grid=(R // row_tile, HW // tile),
        in_specs=[pl.BlockSpec((row_tile, 1), lambda r, t: (r, 0))],
        out_specs=pl.BlockSpec((row_tile, tile), lambda r, t: (r, t)),
        out_shape=jax.ShapeDtypeStruct((R, HW), out_dtype),
        compiler_params=pltpu.CompilerParams(
            dimension_semantics=("parallel", "parallel"),
            vmem_limit_bytes=vmem_limit),
    )(att2)
    return out.reshape(B, C, H, W)


# --------------------------------------------------------------------------------------
# Full ChannelAttention forward
# --------------------------------------------------------------------------------------
def channel_attention_forward(x, p, hw_tile=None):
    B, C, H, W = x.shape
    pooled_sum = adaptive_avg_pool_sum(x, hw_tile)        # (B, C) f32 spatial sums
    att = ca_mlp(pooled_sum, p, H * W)                    # (B, C) f32
    return expand_attention(att, H, W, x.dtype, hw_tile)  # (B, C, H, W) in x.dtype


# --------------------------------------------------------------------------------------
# Pure-JAX reference and deterministic synthetic parameters.
# Weights stored as (in, out) so kernels compute y = x @ W + b.
# --------------------------------------------------------------------------------------
def channel_attention_ref(x, p):
    h = jnp.mean(x.astype(jnp.float32), axis=(2, 3))
    for i in range(3):
        y = h @ p[f"w{i}"] + p[f"b{i}"]
        mu = jnp.mean(y, axis=0, keepdims=True)
        var = jnp.mean((y - mu) ** 2, axis=0, keepdims=True)
        h = jnp.maximum((y - mu) * jax.lax.rsqrt(var + 1e-5) * p[f"g{i}"] + p[f"be{i}"], 0.0)
    att = h @ p["w3"] + p["b3"]
    return jnp.broadcast_to(att[:, :, None, None], x.shape).astype(x.dtype)


def init_params(key, C, reduction=16):
    h = C // reduction
    assert h >= 1, "channel // reduction must be >= 1"
    ks = jax.random.split(key, 8)

    def nrm(k, shape, scale):
        return (scale * jax.random.normal(k, shape)).astype(jnp.float32)

    p = {}
    p["w0"], p["b0"] = nrm(ks[0], (C, h), 0.2), nrm(ks[1], (1, h), 0.05)
    p["g0"], p["be0"] = jnp.ones((1, h), jnp.float32), jnp.zeros((1, h), jnp.float32)
    p["w1"], p["b1"] = nrm(ks[2], (h, h), 0.2), nrm(ks[3], (1, h), 0.05)
    p["g1"], p["be1"] = jnp.ones((1, h), jnp.float32), jnp.zeros((1, h), jnp.float32)
    p["w2"], p["b2"] = nrm(ks[4], (h, h), 0.2), nrm(ks[5], (1, h), 0.05)
    p["g2"], p["be2"] = jnp.ones((1, h), jnp.float32), jnp.zeros((1, h), jnp.float32)
    p["w3"], p["b3"] = nrm(ks[6], (h, C), 0.2), nrm(ks[7], (1, C), 0.05)
    return p


if __name__ == "__main__":
    key = jax.random.PRNGKey(0)
    kp, kx1, kx2, kx3 = jax.random.split(key, 4)

    C = 32                                    # reduction=16 -> hidden=2
    params = init_params(kp, C, reduction=16)

    # 1) Base config: B=2, 16x16 spatial.
    B, H, W = 2, 16, 16
    x = jax.random.normal(kx1, (B, C, H, W), jnp.float32)
    out = jax.block_until_ready(jax.jit(lambda v: channel_attention_forward(v, params))(x))
    ref = channel_attention_ref(x, params)
    assert out.shape == x.shape and out.dtype == x.dtype
    assert bool(jnp.all(jnp.isfinite(out)))
    assert bool(jnp.allclose(out, ref, rtol=1e-3, atol=1e-3)), \
        float(jnp.max(jnp.abs(out - ref)))

    # 2) Multi-step spatial reduction + multi-tile expand (hw_tile=128 forces 8 steps).
    B2, H2, W2 = 3, 32, 32
    x2 = jax.random.normal(kx2, (B2, C, H2, W2), jnp.float32)
    out2 = jax.block_until_ready(
        jax.jit(lambda v: channel_attention_forward(v, params, hw_tile=128))(x2))
    ref2 = channel_attention_ref(x2, params)
    assert out2.shape == x2.shape
    assert bool(jnp.allclose(out2, ref2, rtol=1e-3, atol=1e-3)), \
        float(jnp.max(jnp.abs(out2 - ref2)))

    # 3) Non-128-divisible spatial size: pool zero-pads H*W, expand uses full-extent cols.
    B3, H3, W3 = 2, 10, 10
    x3 = jax.random.normal(kx3, (B3, C, H3, W3), jnp.float32)
    out3 = jax.block_until_ready(jax.jit(lambda v: channel_attention_forward(v, params))(x3))
    ref3 = channel_attention_ref(x3, params)
    assert out3.shape == x3.shape
    assert bool(jnp.allclose(out3, ref3, rtol=1e-3, atol=1e-3)), \
        float(jnp.max(jnp.abs(out3 - ref3)))

    print("KERNEL_OK")
</pallas_src>

<mosaic_0001>
module attributes {stable_mosaic.version = 11 : i64} {
  func.func @_pool_kernel(%arg0: i32, %arg1: i32, %arg2: memref<32x256xf32, #tpu.memory_space<vmem>>, %arg3: memref<32x1xf32, #tpu.memory_space<vmem>>) attributes {dimension_semantics = [#tpu.dimension_semantics<parallel>, #tpu.dimension_semantics<arbitrary>], iteration_bounds = array<i64: 2, 1>, scalar_prefetch = 0 : i64, scratch_operands = 0 : i64, tpu.core_type = #tpu.core_type<tc>, window_params = [{transform_indices = @transform_0, window_bounds = array<i64: 32, 256>}, {transform_indices = @transform_1, window_bounds = array<i64: 32, 1>}]} {
    %c0_i32 = arith.constant 0 : i32
    %0 = arith.cmpi eq, %arg1, %c0_i32 : i32
    %1 = arith.extui %0 : i1 to i32
    %c0_i32_0 = arith.constant 0 : i32
    %2 = arith.cmpi ne, %1, %c0_i32_0 : i32
    scf.if %2 {
      %cst_6 = arith.constant 0.000000e+00 : f32
      %9 = vector.broadcast %cst_6 : f32 to vector<32x1xf32>
      %c0_7 = arith.constant 0 : index
      %c0_8 = arith.constant 0 : index
      %10 = vector.load %arg3[%c0_7, %c0_8] : memref<32x1xf32, #tpu.memory_space<vmem>>, vector<32x1xf32>
      tpu.vector_store %arg3[%c0_7, %c0_8], %9 {strides = array<i32>} : memref<32x1xf32, #tpu.memory_space<vmem>>, vector<32x1xf32>,
    } else {
    }
    %c0 = arith.constant 0 : index
    %c0_1 = arith.constant 0 : index
    %3 = vector.load %arg3[%c0, %c0_1] : memref<32x1xf32, #tpu.memory_space<vmem>>, vector<32x1xf32>
    %c0_2 = arith.constant 0 : index
    %c0_3 = arith.constant 0 : index
    %4 = vector.load %arg2[%c0_2, %c0_3] : memref<32x256xf32, #tpu.memory_space<vmem>>, vector<32x256xf32>
    %cst = arith.constant dense<0.000000e+00> : vector<32xf32>
    %5 = vector.multi_reduction <add>, %4, %cst [1] : vector<32x256xf32> to vector<32xf32>
    %6 = vector.shape_cast %5 : vector<32xf32> to vector<32x1xf32>
    %7 = arith.addf %3, %6 : vector<32x1xf32>
    %c0_4 = arith.constant 0 : index
    %c0_5 = arith.constant 0 : index
    %8 = vector.load %arg3[%c0_4, %c0_5] : memref<32x1xf32, #tpu.memory_space<vmem>>, vector<32x1xf32>
    tpu.vector_store %arg3[%c0_4, %c0_5], %7 {strides = array<i32>} : memref<32x1xf32, #tpu.memory_space<vmem>>, vector<32x1xf32>,
    return
  }
  func.func @transform_0(%arg0: i32, %arg1: i32) -> (i32, i32) {
    %c0_i32 = arith.constant 0 : i32
    return %arg0, %arg1 : i32, i32
  }
  func.func @transform_1(%arg0: i32, %arg1: i32) -> (i32, i32) {
    %c0_i32 = arith.constant 0 : i32
    %c0_i32_0 = arith.constant 0 : i32
    return %arg0, %c0_i32 : i32, i32
  }
}

module attributes {stable_mosaic.version = 11 : i64} {
  func.func @_mlp_kernel(%arg0: memref<2x32xf32, #tpu.memory_space<vmem>>, %arg1: memref<32x2xf32, #tpu.memory_space<vmem>>, %arg2: memref<1x2xf32, #tpu.memory_space<vmem>>, %arg3: memref<1x2xf32, #tpu.memory_space<vmem>>, %arg4: memref<1x2xf32, #tpu.memory_space<vmem>>, %arg5: memref<2x2xf32, #tpu.memory_space<vmem>>, %arg6: memref<1x2xf32, #tpu.memory_space<vmem>>, %arg7: memref<1x2xf32, #tpu.memory_space<vmem>>, %arg8: memref<1x2xf32, #tpu.memory_space<vmem>>, %arg9: memref<2x2xf32, #tpu.memory_space<vmem>>, %arg10: memref<1x2xf32, #tpu.memory_space<vmem>>, %arg11: memref<1x2xf32, #tpu.memory_space<vmem>>, %arg12: memref<1x2xf32, #tpu.memory_space<vmem>>, %arg13: memref<2x32xf32, #tpu.memory_space<vmem>>, %arg14: memref<1x32xf32, #tpu.memory_space<vmem>>, %arg15: memref<2x32xf32, #tpu.memory_space<vmem>>) attributes {dimension_semantics = [], scalar_prefetch = 0 : i64, scratch_operands = 0 : i64, tpu.core_type = #tpu.core_type<tc>} {
    %c0 = arith.constant 0 : index
    %c0_0 = arith.constant 0 : index
    %0 = vector.load %arg0[%c0, %c0_0] : memref<2x32xf32, #tpu.memory_space<vmem>>, vector<2x32xf32>
    %cst = arith.constant 3.906250e-03 : f32
    %1 = vector.broadcast %cst : f32 to vector<2x32xf32>
    %2 = arith.mulf %0, %1 : vector<2x32xf32>
    %c0_1 = arith.constant 0 : index
    %c0_2 = arith.constant 0 : index
    %3 = vector.load %arg1[%c0_1, %c0_2] : memref<32x2xf32, #tpu.memory_space<vmem>>, vector<32x2xf32>
    %cst_3 = arith.constant dense<0.000000e+00> : vector<2x2xf32>
    %4 = tpu.matmul %2, %3, %cst_3 {dimension_numbers = #tpu.dot_dimension_numbers<[1], [0], [0], [1], [0, 0, 1, 1], [], []>} : vector<2x32xf32>, vector<32x2xf32>, vector<2x2xf32> -> vector<2x2xf32>
    %c0_4 = arith.constant 0 : index
    %c0_5 = arith.constant 0 : index
    %5 = vector.load %arg2[%c0_4, %c0_5] : memref<1x2xf32, #tpu.memory_space<vmem>>, vector<1x2xf32>
    %6 = vector.broadcast %5 : vector<1x2xf32> to vector<2x2xf32>
    %7 = arith.addf %4, %6 : vector<2x2xf32>
    %cst_6 = arith.constant dense<0.000000e+00> : vector<2xf32>
    %8 = vector.multi_reduction <add>, %7, %cst_6 [0] : vector<2x2xf32> to vector<2xf32>
    %9 = vector.shape_cast %8 : vector<2xf32> to vector<1x2xf32>
    %cst_7 = arith.constant 2.000000e+00 : f32
    %10 = vector.broadcast %cst_7 : f32 to vector<1x2xf32>
    %11 = arith.divf %9, %10 : vector<1x2xf32>
    %12 = vector.broadcast %11 : vector<1x2xf32> to vector<2x2xf32>
    %13 = arith.subf %7, %12 : vector<2x2xf32>
    %14 = arith.mulf %13, %13 : vector<2x2xf32>
    %cst_8 = arith.constant dense<0.000000e+00> : vector<2xf32>
    %15 = vector.multi_reduction <add>, %14, %cst_8 [0] : vector<2x2xf32> to vector<2xf32>
    %16 = vector.shape_cast %15 : vector<2xf32> to vector<1x2xf32>
    %cst_9 = arith.constant 2.000000e+00 : f32
    %17 = vector.broadcast %cst_9 : f32 to vector<1x2xf32>
    %18 = arith.divf %16, %17 : vector<1x2xf32>
    %19 = vector.broadcast %11 : vector<1x2xf32> to vector<2x2xf32>
    %20 = arith.subf %7, %19 : vector<2x2xf32>
    %cst_10 = arith.constant 9.99999974E-6 : f32
    %21 = vector.broadcast %cst_10 : f32 to vector<1x2xf32>
    %22 = arith.addf %18, %21 : vector<1x2xf32>
    %23 = math.rsqrt %22 : vector<1x2xf32>
    %24 = vector.broadcast %23 : vector<1x2xf32> to vector<2x2xf32>
    %25 = arith.mulf %20, %24 : vector<2x2xf32>
    %c0_11 = arith.constant 0 : index
    %c0_12 = arith.constant 0 : index
    %26 = vector.load %arg3[%c0_11, %c0_12] : memref<1x2xf32, #tpu.memory_space<vmem>>, vector<1x2xf32>
    %27 = vector.broadcast %26 : vector<1x2xf32> to vector<2x2xf32>
    %28 = arith.mulf %25, %27 : vector<2x2xf32>
    %c0_13 = arith.constant 0 : index
    %c0_14 = arith.constant 0 : index
    %29 = vector.load %arg4[%c0_13, %c0_14] : memref<1x2xf32, #tpu.memory_space<vmem>>, vector<1x2xf32>
    %30 = vector.broadcast %29 : vector<1x2xf32> to vector<2x2xf32>
    %31 = arith.addf %28, %30 : vector<2x2xf32>
    %cst_15 = arith.constant 0.000000e+00 : f32
    %32 = vector.broadcast %cst_15 : f32 to vector<2x2xf32>
    %33 = arith.maximumf %31, %32 : vector<2x2xf32>
    %c0_16 = arith.constant 0 : index
    %c0_17 = arith.constant 0 : index
    %34 = vector.load %arg5[%c0_16, %c0_17] : memref<2x2xf32, #tpu.memory_space<vmem>>, vector<2x2xf32>
    %cst_18 = arith.constant dense<0.000000e+00> : vector<2x2xf32>
    %35 = tpu.matmul %33, %34, %cst_18 {dimension_numbers = #tpu.dot_dimension_numbers<[1], [0], [0], [1], [0, 0, 1, 1], [], []>} : vector<2x2xf32>, vector<2x2xf32>, vector<2x2xf32> -> vector<2x2xf32>
    %c0_19 = arith.constant 0 : index
    %c0_20 = arith.constant 0 : index
    %36 = vector.load %arg6[%c0_19, %c0_20] : memref<1x2xf32, #tpu.memory_space<vmem>>, vector<1x2xf32>
    %37 = vector.broadcast %36 : vector<1x2xf32> to vector<2x2xf32>
    %38 = arith.addf %35, %37 : vector<2x2xf32>
    %cst_21 = arith.constant dense<0.000000e+00> : vector<2xf32>
    %39 = vector.multi_reduction <add>, %38, %cst_21 [0] : vector<2x2xf32> to vector<2xf32>
    %40 = vector.shape_cast %39 : vector<2xf32> to vector<1x2xf32>
    %cst_22 = arith.constant 2.000000e+00 : f32
    %41 = vector.broadcast %cst_22 : f32 to vector<1x2xf32>
    %42 = arith.divf %40, %41 : vector<1x2xf32>
    %43 = vector.broadcast %42 : vector<1x2xf32> to vector<2x2xf32>
    %44 = arith.subf %38, %43 : vector<2x2xf32>
    %45 = arith.mulf %44, %44 : vector<2x2xf32>
    %cst_23 = arith.constant dense<0.000000e+00> : vector<2xf32>
    %46 = vector.multi_reduction <add>, %45, %cst_23 [0] : vector<2x2xf32> to vector<2xf32>
    %47 = vector.shape_cast %46 : vector<2xf32> to vector<1x2xf32>
    %cst_24 = arith.constant 2.000000e+00 : f32
    %48 = vector.broadcast %cst_24 : f32 to vector<1x2xf32>
    %49 = arith.divf %47, %48 : vector<1x2xf32>
    %50 = vector.broadcast %42 : vector<1x2xf32> to vector<2x2xf32>
    %51 = arith.subf %38, %50 : vector<2x2xf32>
    %cst_25 = arith.constant 9.99999974E-6 : f32
    %52 = vector.broadcast %cst_25 : f32 to vector<1x2xf32>
    %53 = arith.addf %49, %52 : vector<1x2xf32>
    %54 = math.rsqrt %53 : vector<1x2xf32>
    %55 = vector.broadcast %54 : vector<1x2xf32> to vector<2x2xf32>
    %56 = arith.mulf %51, %55 : vector<2x2xf32>
    %c0_26 = arith.constant 0 : index
    %c0_27 = arith.constant 0 : index
    %57 = vector.load %arg7[%c0_26, %c0_27] : memref<1x2xf32, #tpu.memory_space<vmem>>, vector<1x2xf32>
    %58 = vector.broadcast %57 : vector<1x2xf32> to vector<2x2xf32>
    %59 = arith.mulf %56, %58 : vector<2x2xf32>
    %c0_28 = arith.constant 0 : index
    %c0_29 = arith.constant 0 : index
    %60 = vector.load %arg8[%c0_28, %c0_29] : memref<1x2xf32, #tpu.memory_space<vmem>>, vector<1x2xf32>
    %61 = vector.broadcast %60 : vector<1x2xf32> to vector<2x2xf32>
    %62 = arith.addf %59, %61 : vector<2x2xf32>
    %cst_30 = arith.constant 0.000000e+00 : f32
    %63 = vector.broadcast %cst_30 : f32 to vector<2x2xf32>
    %64 = arith.maximumf %62, %63 : vector<2x2xf32>
    %c0_31 = arith.constant 0 : index
    %c0_32 = arith.constant 0 : index
    %65 = vector.load %arg9[%c0_31, %c0_32] : memref<2x2xf32, #tpu.memory_space<vmem>>, vector<2x2xf32>
    %cst_33 = arith.constant dense<0.000000e+00> : vector<2x2xf32>
    %66 = tpu.matmul %64, %65, %cst_33 {dimension_numbers = #tpu.dot_dimension_numbers<[1], [0], [0], [1], [0, 0, 1, 1], [], []>} : vector<2x2xf32>, vector<2x2xf32>, vector<2x2xf32> -> vector<2x2xf32>
    %c0_34 = arith.constant 0 : index
    %c0_35 = arith.constant 0 : index
    %67 = vector.load %arg10[%c0_34, %c0_35] : memref<1x2xf32, #tpu.memory_space<vmem>>, vector<1x2xf32>
    %68 = vector.broadcast %67 : vector<1x2xf32> to vector<2x2xf32>
    %69 = arith.addf %66, %68 : vector<2x2xf32>
    %cst_36 = arith.constant dense<0.000000e+00> : vector<2xf32>
    %70 = vector.multi_reduction <add>, %69, %cst_36 [0] : vector<2x2xf32> to vector<2xf32>
    %71 = vector.shape_cast %70 : vector<2xf32> to vector<1x2xf32>
    %cst_37 = arith.constant 2.000000e+00 : f32
    %72 = vector.broadcast %cst_37 : f32 to vector<1x2xf32>
    %73 = arith.divf %71, %72 : vector<1x2xf32>
    %74 = vector.broadcast %73 : vector<1x2xf32> to vector<2x2xf32>
    %75 = arith.subf %69, %74 : vector<2x2xf32>
    %76 = arith.mulf %75, %75 : vector<2x2xf32>
    %cst_38 = arith.constant dense<0.000000e+00> : vector<2xf32>
    %77 = vector.multi_reduction <add>, %76, %cst_38 [0] : vector<2x2xf32> to vector<2xf32>
    %78 = vector.shape_cast %77 : vector<2xf32> to vector<1x2xf32>
    %cst_39 = arith.constant 2.000000e+00 : f32
    %79 = vector.broadcast %cst_39 : f32 to vector<1x2xf32>
    %80 = arith.divf %78, %79 : vector<1x2xf32>
    %81 = vector.broadcast %73 : vector<1x2xf32> to vector<2x2xf32>
    %82 = arith.subf %69, %81 : vector<2x2xf32>
    %cst_40 = arith.constant 9.99999974E-6 : f32
    %83 = vector.broadcast %cst_40 : f32 to vector<1x2xf32>
    %84 = arith.addf %80, %83 : vector<1x2xf32>
    %85 = math.rsqrt %84 : vector<1x2xf32>
    %86 = vector.broadcast %85 : vector<1x2xf32> to vector<2x2xf32>
    %87 = arith.mulf %82, %86 : vector<2x2xf32>
    %c0_41 = arith.constant 0 : index
    %c0_42 = arith.constant 0 : index
    %88 = vector.load %arg11[%c0_41, %c0_42] : memref<1x2xf32, #tpu.memory_space<vmem>>, vector<1x2xf32>
    %89 = vector.broadcast %88 : vector<1x2xf32> to vector<2x2xf32>
    %90 = arith.mulf %87, %89 : vector<2x2xf32>
    %c0_43 = arith.constant 0 : index
    %c0_44 = arith.constant 0 : index
    %91 = vector.load %arg12[%c0_43, %c0_44] : memref<1x2xf32, #tpu.memory_space<vmem>>, vector<1x2xf32>
    %92 = vector.broadcast %91 : vector<1x2xf32> to vector<2x2xf32>
    %93 = arith.addf %90, %92 : vector<2x2xf32>
    %cst_45 = arith.constant 0.000000e+00 : f32
    %94 = vector.broadcast %cst_45 : f32 to vector<2x2xf32>
    %95 = arith.maximumf %93, %94 : vector<2x2xf32>
    %c0_46 = arith.constant 0 : index
    %c0_47 = arith.constant 0 : index
    %96 = vector.load %arg13[%c0_46, %c0_47] : memref<2x32xf32, #tpu.memory_space<vmem>>, vector<2x32xf32>
    %cst_48 = arith.constant dense<0.000000e+00> : vector<2x32xf32>
    %97 = tpu.matmul %95, %96, %cst_48 {dimension_numbers = #tpu.dot_dimension_numbers<[1], [0], [0], [1], [0, 0, 1, 1], [], []>} : vector<2x2xf32>, vector<2x32xf32>, vector<2x32xf32> -> vector<2x32xf32>
    %c0_49 = arith.constant 0 : index
    %c0_50 = arith.constant 0 : index
    %98 = vector.load %arg14[%c0_49, %c0_50] : memref<1x32xf32, #tpu.memory_space<vmem>>, vector<1x32xf32>
    %99 = vector.broadcast %98 : vector<1x32xf32> to vector<2x32xf32>
    %100 = arith.addf %97, %99 : vector<2x32xf32>
    %c0_51 = arith.constant 0 : index
    %c0_52 = arith.constant 0 : index
    %101 = vector.load %arg15[%c0_51, %c0_52] : memref<2x32xf32, #tpu.memory_space<vmem>>, vector<2x32xf32>
    tpu.vector_store %arg15[%c0_51, %c0_52], %100 {strides = array<i32>} : memref<2x32xf32, #tpu.memory_space<vmem>>, vector<2x32xf32>,
    return
  }
}

module attributes {stable_mosaic.version = 11 : i64} {
  func.func @_expand_kernel(%arg0: i32, %arg1: i32, %arg2: memref<32x1xf32, #tpu.memory_space<vmem>>, %arg3: memref<32x256xf32, #tpu.memory_space<vmem>>) attributes {dimension_semantics = [#tpu.dimension_semantics<parallel>, #tpu.dimension_semantics<parallel>], iteration_bounds = array<i64: 2, 1>, scalar_prefetch = 0 : i64, scratch_operands = 0 : i64, tpu.core_type = #tpu.core_type<tc>, window_params = [{transform_indices = @transform_0, window_bounds = array<i64: 32, 1>}, {transform_indices = @transform_1, window_bounds = array<i64: 32, 256>}]} {
    %c0 = arith.constant 0 : index
    %c0_0 = arith.constant 0 : index
    %0 = vector.load %arg2[%c0, %c0_0] : memref<32x1xf32, #tpu.memory_space<vmem>>, vector<32x1xf32>
    %1 = vector.shape_cast %0 : vector<32x1xf32> to vector<32x1xf32>
    %2 = vector.broadcast %1 : vector<32x1xf32> to vector<32x256xf32>
    %c0_1 = arith.constant 0 : index
    %c0_2 = arith.constant 0 : index
    %3 = vector.load %arg3[%c0_1, %c0_2] : memref<32x256xf32, #tpu.memory_space<vmem>>, vector<32x256xf32>
    tpu.vector_store %arg3[%c0_1, %c0_2], %2 {strides = array<i32>} : memref<32x256xf32, #tpu.memory_space<vmem>>, vector<32x256xf32>,
    return
  }
  func.func @transform_0(%arg0: i32, %arg1: i32) -> (i32, i32) {
    %c0_i32 = arith.constant 0 : i32
    %c0_i32_0 = arith.constant 0 : i32
    return %arg0, %c0_i32 : i32, i32
  }
  func.func @transform_1(%arg0: i32, %arg1: i32) -> (i32, i32) {
    %c0_i32 = arith.constant 0 : i32
    return %arg0, %arg1 : i32, i32
  }
}

</mosaic_0001>

<llo_original>
// kernel: _lambda_.3
$region0: #{_lambda_.3}
  #allocation0 [shape = 'u32[]', space=smem, size = 0x4, offset = 0x4, fixed_abs, tag = 'smem constant byte address 0x4 - core index']
  #allocation1 [shape = 'u32[144,128]{1,0:T(1,128)}', space=vmem, size = 0x12000, scoped, tag = 'internal scratch']
  %s0 = inlined_call_operand.vmem [shape: f32[64,256], index: 0, kind: input, shape index: {}]
  %s1 = inlined_call_operand.vmem [shape: f32[64,1], index: 1, kind: output, shape index: {}]
  %s2 = sld [smem:[#allocation0]]
  $region41: #{_lambda_.3} parent=0
    _
  %s4 = ssub.s32 1, %s2
  %s5 = scalar_select 0, %s4, %s2
  loop: start=0, step=1, limit=4
  $region2: #{_lambda_.3} parent=0 // loop_pre_header
    _
  $region3: #{_lambda_.3} parent=0 // loop_header
    %s7 = sphi 0, %s11
    %p8 = scmp.ge.s32.totalorder %s7, 4
    %s14 = sphi 0, %s26
    %s15 = sphi 0, %s22
    %s16 = sphi 0, %s14
    %s17 = sphi 0, %s15
    %s18 = sphi 0, %s16
    %s19 = sphi 0, %s17
    %s31 = sphi 0, %s33
    %s34 = sphi 0, %s31
    %s35 = sphi 0, %s34
    %s51 = sphi 0, %s35
    %s57 = sphi 0, %s59
    %s60 = sphi 0, %s57
    %s61 = sphi 0, %s60
    %s77 = sphi 0, %s61
  $region4: #{_lambda_.3} parent=0 // loop_header_branch
    %10 = sbr.rel (%p8) target = $region8
  $region5: #{_lambda_.3} parent=0 // loop_body
    %s12 = ssub.s32 %s7, 1
    %s13 = ssub.s32 %s7, 2
    %s20 = sadd.s32 1, %s15
    %p21 = scmp.ge.s32.totalorder %s20, 1
    %s22 = scalar_select %p21, 0, %s20
    %s23 = sadd.s32 1, %s14
    %s24 = scalar_select %p21, %s23, %s14
    %p25 = scmp.ge.s32.totalorder %s24, 2
    %s26 = scalar_select %p25, 0, %s24
    %s27 = ssub.s32 %s14, %s26
    %s28 = ssub.s32 %s15, %s22
    %s29 = sor.u32 %s27, %s28
    %p30 = scmp.eq.s32.totalorder %s29, 0
    %s32 = sadd.s32 %s31, 1
    %s33 = scalar_select %p30, %s31, %s32
    %p36 = pneg %p30
    %p37 = scmp.eq.s32.totalorder %s7, 1
    %p38 = por %p36, %p37
    %p39 = scmp.ne.s32.totalorder %s31, %s34
    %p40 = scmp.eq.s32.totalorder %s7, 0
    %p41 = por %p39, %p40
    %p42 = scmp.ne.s32.totalorder %s31, %s34
    %p43 = scmp.eq.s32.totalorder %s12, 1
    %p44 = por %p42, %p43
    %p45 = scmp.ne.s32.totalorder %s34, %s35
    %p46 = scmp.eq.s32.totalorder %s12, 0
    %p47 = por %p45, %p46
    %p48 = scmp.ne.s32.totalorder %s34, %s35
    %p49 = scmp.eq.s32.totalorder %s13, 1
    %p50 = por %p48, %p49
    %p52 = scmp.ne.s32.totalorder %s35, %s51
    %p53 = scmp.eq.s32.totalorder %s13, 0
    %p54 = por %p52, %p53
    %s55 = ssub.s32 %s14, %s26
    %p56 = scmp.eq.s32.totalorder %s55, 0
    %s58 = sadd.s32 %s57, 1
    %s59 = scalar_select %p56, %s57, %s58
    %p62 = pneg %p56
    %p63 = scmp.eq.s32.totalorder %s7, 1
    %p64 = por %p62, %p63
    %p65 = scmp.ne.s32.totalorder %s57, %s60
    %p66 = scmp.eq.s32.totalorder %s7, 0
    %p67 = por %p65, %p66
    %p68 = scmp.ne.s32.totalorder %s57, %s60
    %p69 = scmp.eq.s32.totalorder %s12, 1
    %p70 = por %p68, %p69
    %p71 = scmp.ne.s32.totalorder %s60, %s61
    %p72 = scmp.eq.s32.totalorder %s12, 0
    %p73 = por %p71, %p72
    %p74 = scmp.ne.s32.totalorder %s60, %s61
    %p75 = scmp.eq.s32.totalorder %s13, 1
    %p76 = por %p74, %p75
    %p78 = scmp.ne.s32.totalorder %s61, %s77
    %p79 = scmp.eq.s32.totalorder %s13, 0
    %p80 = por %p78, %p79
    %p81 = scmp.le.s32.totalorder 1, %s7
    %p82 = scmp.lt.s32.totalorder %s7, 3
    %p83 = pnand %p81, %p82
    %p84 = pneg %p83
    // Predicated region
    $region9: #{_lambda_.3} parent=5 // pred_check
      _
    $region10: #{_lambda_.3} parent=5 // pred_check_branch
      %86 = sbr.rel (%p83) target = $region12
    $region11: #{_lambda_.3} parent=5 // pred_region
      %s87 = ssub.s32 %s7, 1
    $region12: #{_lambda_.3} parent=5 // pred_fallthru
      _
    %p88 = scmp.lt.s32.totalorder %s7, 2
    // Predicated region
    $region13: #{_lambda_.3} parent=5 // pred_check
      %p89 = pneg %p88
    $region14: #{_lambda_.3} parent=5 // pred_check_branch
      %91 = sbr.rel (%p89) target = $region16
    $region15: #{_lambda_.3} parent=5 // pred_region
      // Predicated region
      $region17: #{_lambda_.3} parent=15 // pred_check
        %p92 = pneg %p41
      $region18: #{_lambda_.3} parent=15 // pred_check_branch
        %94 = sbr.rel (%p92) target = $region20
      $region19: #{_lambda_.3} parent=15 // pred_region
        %s95 = smul.u32 4, %s14
        %s96 = smul.u32 2, %s15
        %p97 = scmp.lt.s32.totalorder %s95, 7
        %s98 = scalar_select %p97, %s95, 7
        %p99 = scmp.lt.s32.totalorder %s96, 1
        %s100 = scalar_select %p99, %s96, 1
        %s101 = smul.addr %s98, 2
        %s102 = sadd.s32 %s100, %s101
        %s103 = smul.addr %s102, 8
        %s104 = scalar_lea.vmem %s0, %s103
        %s105 = smul.u32 4, %s14
        %s106 = smul.u32 2, %s15
      $region20: #{_lambda_.3} parent=15 // pred_fallthru
        _
    $region16: #{_lambda_.3} parent=5 // pred_fallthru
      _
    %p107 = scmp.le.s32.totalorder 1, %s7
    %p108 = scmp.lt.s32.totalorder %s7, 3
    %p109 = pnand %p107, %p108
    %p110 = pneg %p109
    // Predicated region
    $region21: #{_lambda_.3} parent=5 // pred_check
      _
    $region22: #{_lambda_.3} parent=5 // pred_check_branch
      %112 = sbr.rel (%p109) target = $region24
    $region23: #{_lambda_.3} parent=5 // pred_region
      %s113 = ssub.s32 %s7, 1
      %s114 = smul.u32 4, %s16
      %s115 = smul.u32 2, %s17
      %p116 = scmp.lt.s32.totalorder %s114, 7
      %s117 = scalar_select %p116, %s114, 7
      %p118 = scmp.lt.s32.totalorder %s115, 1
      %s119 = scalar_select %p118, %s115, 1
      %s120 = smul.addr %s117, 2
      %s121 = sadd.s32 %s119, %s120
      %s122 = smul.addr %s121, 8
      %s123 = scalar_lea.vmem %s0, %s122
      %p124 = pneg %p47
      %p125 = pneg %p44
      %p126 = pneg %p73
      %p127 = pneg %p70
      %s128 = smul.u32 4, %s16
      %p129 = scmp.lt.s32.totalorder %s128, 7
      %s130 = scalar_select %p129, %s128, 7
      %s131 = smul.addr %s130, 8
      %s132 = scalar_lea.vmem %s1, %s131
      %s133 = smul.u32 4, %s16
      %s134 = smul.u32 2, %s17
      %p135 = scmp.lt.s32.totalorder %s133, 7
      %s136 = scalar_select %p135, %s133, 7
      %p137 = scmp.lt.s32.totalorder %s134, 1
      %s138 = scalar_select %p137, %s134, 1
      %s139 = smul.addr %s136, 2
      %s140 = sadd.s32 %s138, %s139
      %s141 = smul.addr %s140, 8
      %s142 = scalar_lea.vmem %s0, %s141
      %s143 = smul.u32 4, %s16
      %s144 = smul.u32 2, %s17
      %s145 = smul.u32 4, %s16
      %p146 = scmp.lt.s32.totalorder %s145, 7
      %s147 = scalar_select %p146, %s145, 7
      %s148 = smul.addr %s147, 8
      %s149 = scalar_lea.vmem %s1, %s148
      %s150 = smul.u32 4, %s16
      %p151 = scmp.eq.s32.totalorder %s17, 0
      // Predicated region
      $region25: #{_lambda_.3} parent=23 // pred_check
        %p152 = pneg %p151
      $region26: #{_lambda_.3} parent=23 // pred_check_branch
        %154 = sbr.rel (%p152) target = $region28
      $region27: #{_lambda_.3} parent=23 // pred_region
        %vm155 = vcmask 7168
        %156 = vst.msk [vmem:[%s149] sm:$0xff] %vm155, 0.0
        %157 = vst.msk [vmem:[%s149 + $0x8] sm:$0xff] %vm155, 0.0
        %158 = vst.msk [vmem:[%s149 + $0x10] sm:$0xff] %vm155, 0.0
        %159 = vst.msk [vmem:[%s149 + $0x18] sm:$0xff] %vm155, 0.0
      $region28: #{_lambda_.3} parent=23 // pred_fallthru
        _
      %v160 = vld [vmem:[%s149] sm:$0xff]
      %v161 = vld [vmem:[%s149 + $0x8] sm:$0xff]
      %v162 = vld [vmem:[%s149 + $0x10] sm:$0xff]
      %v163 = vld [vmem:[%s149 + $0x18] sm:$0xff]
      %v164 = vld [vmem:[%s142] sm:$0xff]
      %v165 = vld [vmem:[%s142 + $0x8] sm:$0xff]
      %v166 = vld [vmem:[%s142 + $0x10] sm:$0xff]
      %v167 = vld [vmem:[%s142 + $0x18] sm:$0xff]
      %v168 = vld [vmem:[%s142 + $0x20] sm:$0xff]
      %v169 = vld [vmem:[%s142 + $0x28] sm:$0xff]
      %v170 = vld [vmem:[%s142 + $0x30] sm:$0xff]
      %v171 = vld [vmem:[%s142 + $0x38] sm:$0xff]
      %v172 = vadd.f32 %v164, %v165
      %173 = vadd.xlane.f32.xlu0 %v172
      %v174 = vpop.xlane.xlu0 %173
      %v175 = vadd.f32 %v166, %v167
      %176 = vadd.xlane.f32.xlu0 %v175
      %v177 = vpop.xlane.xlu0 %176
      %v178 = vadd.f32 %v168, %v169
      %179 = vadd.xlane.f32.xlu0 %v178
      %v180 = vpop.xlane.xlu0 %179
      %v181 = vadd.f32 %v170, %v171
      %182 = vadd.xlane.f32.xlu0 %v181
      %v183 = vpop.xlane.xlu0 %182
      %v184 = vadd.f32 %v160, %v174
      %v185 = vadd.f32 %v161, %v177
      %v186 = vadd.f32 %v162, %v180
      %v187 = vadd.f32 %v163, %v183
      %vm188 = vcmask 7168
      %189 = vst.msk [vmem:[%s149] sm:$0xff] %vm188, %v184
      %190 = vst.msk [vmem:[%s149 + $0x8] sm:$0xff] %vm188, %v185
      %191 = vst.msk [vmem:[%s149 + $0x10] sm:$0xff] %vm188, %v186
      %192 = vst.msk [vmem:[%s149 + $0x18] sm:$0xff] %vm188, %v187
      %s193 = smul.u32 4, %s16
      %p194 = scmp.lt.s32.totalorder %s193, 7
      %s195 = scalar_select %p194, %s193, 7
      %s196 = smul.addr %s195, 8
      %s197 = scalar_lea.vmem %s1, %s196
      // Predicated region
      $region29: #{_lambda_.3} parent=23 // pred_check
        %p198 = pneg %p70
      $region30: #{_lambda_.3} parent=23 // pred_check_branch
        %200 = sbr.rel (%p198) target = $region32
      $region31: #{_lambda_.3} parent=23 // pred_region
        %s201 = smul.u32 4, %s16
      $region32: #{_lambda_.3} parent=23 // pred_fallthru
        _
    $region24: #{_lambda_.3} parent=5 // pred_fallthru
      _
    %p202 = scmp.le.s32.totalorder 2, %s7
    // Predicated region
    $region33: #{_lambda_.3} parent=5 // pred_check
      %p203 = pneg %p202
    $region34: #{_lambda_.3} parent=5 // pred_check_branch
      %205 = sbr.rel (%p203) target = $region36
    $region35: #{_lambda_.3} parent=5 // pred_region
      %s206 = ssub.s32 %s7, 2
      // Predicated region
      $region37: #{_lambda_.3} parent=35 // pred_check
        %p207 = pneg %p76
      $region38: #{_lambda_.3} parent=35 // pred_check_branch
        %209 = sbr.rel (%p207) target = $region40
      $region39: #{_lambda_.3} parent=35 // pred_region
        %s210 = smul.u32 4, %s18
        %p211 = scmp.lt.s32.totalorder %s210, 7
        %s212 = scalar_select %p211, %s210, 7
        %s213 = smul.addr %s212, 8
        %s214 = scalar_lea.vmem %s1, %s213
      $region40: #{_lambda_.3} parent=35 // pred_fallthru
        _
    $region36: #{_lambda_.3} parent=5 // pred_fallthru
      _
  $region6: #{_lambda_.3} parent=0 // loop_footer
    %s11 = sadd.s32 1, %s7
  $region7: #{_lambda_.3} parent=0 // loop_footer_branch
    %6 = sbr.rel target = $region3
  $region8: #{_lambda_.3} parent=0 // loop_exit
    _

// kernel: _lambda_.5
$region0: #{_lambda_.5}
  #allocation0 [shape = 'u32[]', space=smem, size = 0x4, offset = 0x4, fixed_abs, tag = 'smem constant byte address 0x4 - core index']
  #allocation1 [shape = 'u32[144,128]{1,0:T(1,128)}', space=vmem, size = 0x12000, scoped, tag = 'internal scratch']
  %s0 = inlined_call_operand.vmem [shape: f32[64,1], index: 0, kind: input, shape index: {}]
  %s1 = inlined_call_operand.vmem [shape: f32[64,256], index: 1, kind: output, shape index: {}]
  %s2 = sld [smem:[#allocation0]]
  $region37: #{_lambda_.5} parent=0
    _
  %s4 = ssub.s32 1, %s2
  %s5 = scalar_select 0, %s4, %s2
  loop: start=0, step=1, limit=4
  $region2: #{_lambda_.5} parent=0 // loop_pre_header
    _
  $region3: #{_lambda_.5} parent=0 // loop_header
    %s7 = sphi 0, %s11
    %p8 = scmp.ge.s32.totalorder %s7, 4
    %s14 = sphi 0, %s26
    %s15 = sphi 0, %s22
    %s16 = sphi 0, %s14
    %s17 = sphi 0, %s15
    %s18 = sphi 0, %s16
    %s19 = sphi 0, %s17
    %s29 = sphi 0, %s31
    %s32 = sphi 0, %s29
    %s33 = sphi 0, %s32
    %s49 = sphi 0, %s33
    %s57 = sphi 0, %s59
    %s60 = sphi 0, %s57
    %s61 = sphi 0, %s60
    %s77 = sphi 0, %s61
  $region4: #{_lambda_.5} parent=0 // loop_header_branch
    %10 = sbr.rel (%p8) target = $region8
  $region5: #{_lambda_.5} parent=0 // loop_body
    %s12 = ssub.s32 %s7, 1
    %s13 = ssub.s32 %s7, 2
    %s20 = sadd.s32 1, %s15
    %p21 = scmp.ge.s32.totalorder %s20, 1
    %s22 = scalar_select %p21, 0, %s20
    %s23 = sadd.s32 1, %s14
    %s24 = scalar_select %p21, %s23, %s14
    %p25 = scmp.ge.s32.totalorder %s24, 2
    %s26 = scalar_select %p25, 0, %s24
    %s27 = ssub.s32 %s14, %s26
    %p28 = scmp.eq.s32.totalorder %s27, 0
    %s30 = sadd.s32 %s29, 1
    %s31 = scalar_select %p28, %s29, %s30
    %p34 = pneg %p28
    %p35 = scmp.eq.s32.totalorder %s7, 1
    %p36 = por %p34, %p35
    %p37 = scmp.ne.s32.totalorder %s29, %s32
    %p38 = scmp.eq.s32.totalorder %s7, 0
    %p39 = por %p37, %p38
    %p40 = scmp.ne.s32.totalorder %s29, %s32
    %p41 = scmp.eq.s32.totalorder %s12, 1
    %p42 = por %p40, %p41
    %p43 = scmp.ne.s32.totalorder %s32, %s33
    %p44 = scmp.eq.s32.totalorder %s12, 0
    %p45 = por %p43, %p44
    %p46 = scmp.ne.s32.totalorder %s32, %s33
    %p47 = scmp.eq.s32.totalorder %s13, 1
    %p48 = por %p46, %p47
    %p50 = scmp.ne.s32.totalorder %s33, %s49
    %p51 = scmp.eq.s32.totalorder %s13, 0
    %p52 = por %p50, %p51
    %s53 = ssub.s32 %s14, %s26
    %s54 = ssub.s32 %s15, %s22
    %s55 = sor.u32 %s53, %s54
    %p56 = scmp.eq.s32.totalorder %s55, 0
    %s58 = sadd.s32 %s57, 1
    %s59 = scalar_select %p56, %s57, %s58
    %p62 = pneg %p56
    %p63 = scmp.eq.s32.totalorder %s7, 1
    %p64 = por %p62, %p63
    %p65 = scmp.ne.s32.totalorder %s57, %s60
    %p66 = scmp.eq.s32.totalorder %s7, 0
    %p67 = por %p65, %p66
    %p68 = scmp.ne.s32.totalorder %s57, %s60
    %p69 = scmp.eq.s32.totalorder %s12, 1
    %p70 = por %p68, %p69
    %p71 = scmp.ne.s32.totalorder %s60, %s61
    %p72 = scmp.eq.s32.totalorder %s12, 0
    %p73 = por %p71, %p72
    %p74 = scmp.ne.s32.totalorder %s60, %s61
    %p75 = scmp.eq.s32.totalorder %s13, 1
    %p76 = por %p74, %p75
    %p78 = scmp.ne.s32.totalorder %s61, %s77
    %p79 = scmp.eq.s32.totalorder %s13, 0
    %p80 = por %p78, %p79
    %p81 = scmp.le.s32.totalorder 1, %s7
    %p82 = scmp.lt.s32.totalorder %s7, 3
    %p83 = pnand %p81, %p82
    %p84 = pneg %p83
    // Predicated region
    $region9: #{_lambda_.5} parent=5 // pred_check
      _
    $region10: #{_lambda_.5} parent=5 // pred_check_branch
      %86 = sbr.rel (%p83) target = $region12
    $region11: #{_lambda_.5} parent=5 // pred_region
      %s87 = ssub.s32 %s7, 1
    $region12: #{_lambda_.5} parent=5 // pred_fallthru
      _
    %p88 = scmp.lt.s32.totalorder %s7, 2
    // Predicated region
    $region13: #{_lambda_.5} parent=5 // pred_check
      %p89 = pneg %p88
    $region14: #{_lambda_.5} parent=5 // pred_check_branch
      %91 = sbr.rel (%p89) target = $region16
    $region15: #{_lambda_.5} parent=5 // pred_region
      // Predicated region
      $region17: #{_lambda_.5} parent=15 // pred_check
        %p92 = pneg %p39
      $region18: #{_lambda_.5} parent=15 // pred_check_branch
        %94 = sbr.rel (%p92) target = $region20
      $region19: #{_lambda_.5} parent=15 // pred_region
        %s95 = smul.u32 4, %s14
        %p96 = scmp.lt.s32.totalorder %s95, 7
        %s97 = scalar_select %p96, %s95, 7
        %s98 = smul.addr %s97, 8
        %s99 = scalar_lea.vmem %s0, %s98
        %s100 = smul.u32 4, %s14
      $region20: #{_lambda_.5} parent=15 // pred_fallthru
        _
    $region16: #{_lambda_.5} parent=5 // pred_fallthru
      _
    %p101 = scmp.le.s32.totalorder 1, %s7
    %p102 = scmp.lt.s32.totalorder %s7, 3
    %p103 = pnand %p101, %p102
    %p104 = pneg %p103
    // Predicated region
    $region21: #{_lambda_.5} parent=5 // pred_check
      _
    $region22: #{_lambda_.5} parent=5 // pred_check_branch
      %106 = sbr.rel (%p103) target = $region24
    $region23: #{_lambda_.5} parent=5 // pred_region
      %s107 = ssub.s32 %s7, 1
      %s108 = smul.u32 4, %s16
      %p109 = scmp.lt.s32.totalorder %s108, 7
      %s110 = scalar_select %p109, %s108, 7
      %s111 = smul.addr %s110, 8
      %s112 = scalar_lea.vmem %s0, %s111
      %p113 = pneg %p45
      %p114 = pneg %p42
      %p115 = pneg %p73
      %p116 = pneg %p70
      %s117 = smul.u32 4, %s16
      %s118 = smul.u32 2, %s17
      %p119 = scmp.lt.s32.totalorder %s117, 7
      %s120 = scalar_select %p119, %s117, 7
      %p121 = scmp.lt.s32.totalorder %s118, 1
      %s122 = scalar_select %p121, %s118, 1
      %s123 = smul.addr %s120, 2
      %s124 = sadd.s32 %s122, %s123
      %s125 = smul.addr %s124, 8
      %s126 = scalar_lea.vmem %s1, %s125
      %s127 = smul.u32 4, %s16
      %p128 = scmp.lt.s32.totalorder %s127, 7
      %s129 = scalar_select %p128, %s127, 7
      %s130 = smul.addr %s129, 8
      %s131 = scalar_lea.vmem %s0, %s130
      %s132 = smul.u32 4, %s16
      %s133 = smul.u32 4, %s16
      %s134 = smul.u32 2, %s17
      %p135 = scmp.lt.s32.totalorder %s133, 7
      %s136 = scalar_select %p135, %s133, 7
      %p137 = scmp.lt.s32.totalorder %s134, 1
      %s138 = scalar_select %p137, %s134, 1
      %s139 = smul.addr %s136, 2
      %s140 = sadd.s32 %s138, %s139
      %s141 = smul.addr %s140, 8
      %s142 = scalar_lea.vmem %s1, %s141
      %s143 = smul.u32 4, %s16
      %s144 = smul.u32 2, %s17
      %v145 = vld [vmem:[%s131] sm:$0xff]
      %v146 = vld [vmem:[%s131 + $0x8] sm:$0xff]
      %v147 = vld [vmem:[%s131 + $0x10] sm:$0xff]
      %v148 = vld [vmem:[%s131 + $0x18] sm:$0xff]
      %150 = vset.pattern.permute.xlu0 0
      %151 = vperm.xlu0 %150, %v145
      %v152 = vpop.permute.xlu0 %151
      %155 = vset.pattern.permute.xlu0 0
      %156 = vperm.xlu0 %155, %v146
      %v157 = vpop.permute.xlu0 %156
      %160 = vset.pattern.permute.xlu0 0
      %161 = vperm.xlu0 %160, %v147
      %v162 = vpop.permute.xlu0 %161
      %165 = vset.pattern.permute.xlu0 0
      %166 = vperm.xlu0 %165, %v148
      %v167 = vpop.permute.xlu0 %166
      %169 = vst [vmem:[%s142] sm:$0xff] %v152
      %170 = vst [vmem:[%s142 + $0x8] sm:$0xff] %v152
      %171 = vst [vmem:[%s142 + $0x10] sm:$0xff] %v157
      %172 = vst [vmem:[%s142 + $0x18] sm:$0xff] %v157
      %173 = vst [vmem:[%s142 + $0x20] sm:$0xff] %v162
      %174 = vst [vmem:[%s142 + $0x28] sm:$0xff] %v162
      %175 = vst [vmem:[%s142 + $0x30] sm:$0xff] %v167
      %176 = vst [vmem:[%s142 + $0x38] sm:$0xff] %v167
      %s177 = smul.u32 4, %s16
      %s178 = smul.u32 2, %s17
      %p179 = scmp.lt.s32.totalorder %s177, 7
      %s180 = scalar_select %p179, %s177, 7
      %p181 = scmp.lt.s32.totalorder %s178, 1
      %s182 = scalar_select %p181, %s178, 1
      %s183 = smul.addr %s180, 2
      %s184 = sadd.s32 %s182, %s183
      %s185 = smul.addr %s184, 8
      %s186 = scalar_lea.vmem %s1, %s185
      // Predicated region
      $region25: #{_lambda_.5} parent=23 // pred_check
        %p187 = pneg %p70
      $region26: #{_lambda_.5} parent=23 // pred_check_branch
        %189 = sbr.rel (%p187) target = $region28
      $region27: #{_lambda_.5} parent=23 // pred_region
        %s190 = smul.u32 4, %s16
        %s191 = smul.u32 2, %s17
      $region28: #{_lambda_.5} parent=23 // pred_fallthru
        _
    $region24: #{_lambda_.5} parent=5 // pred_fallthru
      _
    %p192 = scmp.le.s32.totalorder 2, %s7
    // Predicated region
    $region29: #{_lambda_.5} parent=5 // pred_check
      %p193 = pneg %p192
    $region30: #{_lambda_.5} parent=5 // pred_check_branch
      %195 = sbr.rel (%p193) target = $region32
    $region31: #{_lambda_.5} parent=5 // pred_region
      %s196 = ssub.s32 %s7, 2
      // Predicated region
      $region33: #{_lambda_.5} parent=31 // pred_check
        %p197 = pneg %p76
      $region34: #{_lambda_.5} parent=31 // pred_check_branch
        %199 = sbr.rel (%p197) target = $region36
      $region35: #{_lambda_.5} parent=31 // pred_region
        %s200 = smul.u32 4, %s18
        %s201 = smul.u32 2, %s19
        %p202 = scmp.lt.s32.totalorder %s200, 7
        %s203 = scalar_select %p202, %s200, 7
        %p204 = scmp.lt.s32.totalorder %s201, 1
        %s205 = scalar_select %p204, %s201, 1
        %s206 = smul.addr %s203, 2
        %s207 = sadd.s32 %s205, %s206
        %s208 = smul.addr %s207, 8
        %s209 = scalar_lea.vmem %s1, %s208
      $region36: #{_lambda_.5} parent=31 // pred_fallthru
        _
    $region32: #{_lambda_.5} parent=5 // pred_fallthru
      _
  $region6: #{_lambda_.5} parent=0 // loop_footer
    %s11 = sadd.s32 1, %s7
  $region7: #{_lambda_.5} parent=0 // loop_footer_branch
    %6 = sbr.rel target = $region3
  $region8: #{_lambda_.5} parent=0 // loop_exit
    _

// kernel: _lambda_.4
$region0: #{_lambda_.4}
  #allocation0 [shape = 'u32[]', space=smem, size = 0x4, offset = 0x4, fixed_abs, tag = 'smem constant byte address 0x4 - core index']
  #allocation1 [shape = 'u32[144,128]{1,0:T(1,128)}', space=vmem, size = 0x12000, scoped, tag = 'internal scratch']
  %s0 = inlined_call_operand.vmem [shape: f32[2,32], index: 0, kind: input, shape index: {}]
  %s1 = inlined_call_operand.vmem [shape: f32[32,2], index: 1, kind: input, shape index: {}]
  %s2 = inlined_call_operand.vmem [shape: f32[1,2], index: 2, kind: input, shape index: {}]
  %s3 = inlined_call_operand.vmem [shape: f32[1,2], index: 3, kind: input, shape index: {}, may-alias: {3,7,11}]
  %s4 = inlined_call_operand.vmem [shape: f32[1,2], index: 4, kind: input, shape index: {}, may-alias: {4,8,12}]
  %s5 = inlined_call_operand.vmem [shape: f32[2,2], index: 5, kind: input, shape index: {}]
  %s6 = inlined_call_operand.vmem [shape: f32[1,2], index: 6, kind: input, shape index: {}]
  %s7 = inlined_call_operand.vmem [shape: f32[1,2], index: 7, kind: input, shape index: {}, may-alias: {3,7,11}]
  %s8 = inlined_call_operand.vmem [shape: f32[1,2], index: 8, kind: input, shape index: {}, may-alias: {4,8,12}]
  %s9 = inlined_call_operand.vmem [shape: f32[2,2], index: 9, kind: input, shape index: {}]
  %s10 = inlined_call_operand.vmem [shape: f32[1,2], index: 10, kind: input, shape index: {}]
  %s11 = inlined_call_operand.vmem [shape: f32[1,2], index: 11, kind: input, shape index: {}, may-alias: {3,7,11}]
  %s12 = inlined_call_operand.vmem [shape: f32[1,2], index: 12, kind: input, shape index: {}, may-alias: {4,8,12}]
  %s13 = inlined_call_operand.vmem [shape: f32[2,32], index: 13, kind: input, shape index: {}]
  %s14 = inlined_call_operand.vmem [shape: f32[1,32], index: 14, kind: input, shape index: {}]
  %s15 = inlined_call_operand.vmem [shape: f32[2,32], index: 15, kind: output, shape index: {}]
  %s16 = sld [smem:[#allocation0]]
  $region70: #{_lambda_.4} parent=0
    _
  %s18 = ssub.s32 1, %s16
  %s19 = scalar_select 0, %s18, %s16
  // Predicated region
  $region2: #{_lambda_.4} parent=0 // pred_check
    _
  $region3: #{_lambda_.4} parent=0 // pred_check_branch
    %21 = sbr.rel (0) target = $region5
  $region4: #{_lambda_.4} parent=0 // pred_region
    _
  $region5: #{_lambda_.4} parent=0 // pred_fallthru
    _
  // Predicated region
  $region6: #{_lambda_.4} parent=0 // pred_check
    _
  $region7: #{_lambda_.4} parent=0 // pred_check_branch
    %23 = sbr.rel (0) target = $region9
  $region8: #{_lambda_.4} parent=0 // pred_region
    _
  $region9: #{_lambda_.4} parent=0 // pred_fallthru
    _
  // Predicated region
  $region10: #{_lambda_.4} parent=0 // pred_check
    _
  $region11: #{_lambda_.4} parent=0 // pred_check_branch
    %25 = sbr.rel (0) target = $region13
  $region12: #{_lambda_.4} parent=0 // pred_region
    _
  $region13: #{_lambda_.4} parent=0 // pred_fallthru
    _
  // Predicated region
  $region14: #{_lambda_.4} parent=0 // pred_check
    _
  $region15: #{_lambda_.4} parent=0 // pred_check_branch
    %27 = sbr.rel (0) target = $region17
  $region16: #{_lambda_.4} parent=0 // pred_region
    _
  $region17: #{_lambda_.4} parent=0 // pred_fallthru
    _
  // Predicated region
  $region18: #{_lambda_.4} parent=0 // pred_check
    _
  $region19: #{_lambda_.4} parent=0 // pred_check_branch
    %29 = sbr.rel (0) target = $region21
  $region20: #{_lambda_.4} parent=0 // pred_region
    _
  $region21: #{_lambda_.4} parent=0 // pred_fallthru
    _
  // Predicated region
  $region22: #{_lambda_.4} parent=0 // pred_check
    _
  $region23: #{_lambda_.4} parent=0 // pred_check_branch
    %31 = sbr.rel (0) target = $region25
  $region24: #{_lambda_.4} parent=0 // pred_region
    _
  $region25: #{_lambda_.4} parent=0 // pred_fallthru
    _
  // Predicated region
  $region26: #{_lambda_.4} parent=0 // pred_check
    _
  $region27: #{_lambda_.4} parent=0 // pred_check_branch
    %33 = sbr.rel (0) target = $region29
  $region28: #{_lambda_.4} parent=0 // pred_region
    _
  $region29: #{_lambda_.4} parent=0 // pred_fallthru
    _
  // Predicated region
  $region30: #{_lambda_.4} parent=0 // pred_check
    _
  $region31: #{_lambda_.4} parent=0 // pred_check_branch
    %35 = sbr.rel (0) target = $region33
  $region32: #{_lambda_.4} parent=0 // pred_region
    _
  $region33: #{_lambda_.4} parent=0 // pred_fallthru
    _
  // Predicated region
  $region34: #{_lambda_.4} parent=0 // pred_check
    _
  $region35: #{_lambda_.4} parent=0 // pred_check_branch
    %37 = sbr.rel (0) target = $region37
  $region36: #{_lambda_.4} parent=0 // pred_region
    _
  $region37: #{_lambda_.4} parent=0 // pred_fallthru
    _
  // Predicated region
  $region38: #{_lambda_.4} parent=0 // pred_check
    _
  $region39: #{_lambda_.4} parent=0 // pred_check_branch
    %39 = sbr.rel (0) target = $region41
  $region40: #{_lambda_.4} parent=0 // pred_region
    _
  $region41: #{_lambda_.4} parent=0 // pred_fallthru
    _
  // Predicated region
  $region42: #{_lambda_.4} parent=0 // pred_check
    _
  $region43: #{_lambda_.4} parent=0 // pred_check_branch
    %41 = sbr.rel (0) target = $region45
  $region44: #{_lambda_.4} parent=0 // pred_region
    _
  $region45: #{_lambda_.4} parent=0 // pred_fallthru
    _
  // Predicated region
  $region46: #{_lambda_.4} parent=0 // pred_check
    _
  $region47: #{_lambda_.4} parent=0 // pred_check_branch
    %43 = sbr.rel (0) target = $region49
  $region48: #{_lambda_.4} parent=0 // pred_region
    _
  $region49: #{_lambda_.4} parent=0 // pred_fallthru
    _
  // Predicated region
  $region50: #{_lambda_.4} parent=0 // pred_check
    _
  $region51: #{_lambda_.4} parent=0 // pred_check_branch
    %45 = sbr.rel (0) target = $region53
  $region52: #{_lambda_.4} parent=0 // pred_region
    _
  $region53: #{_lambda_.4} parent=0 // pred_fallthru
    _
  // Predicated region
  $region54: #{_lambda_.4} parent=0 // pred_check
    _
  $region55: #{_lambda_.4} parent=0 // pred_check_branch
    %47 = sbr.rel (0) target = $region57
  $region56: #{_lambda_.4} parent=0 // pred_region
    _
  $region57: #{_lambda_.4} parent=0 // pred_fallthru
    _
  // Predicated region
  $region58: #{_lambda_.4} parent=0 // pred_check
    _
  $region59: #{_lambda_.4} parent=0 // pred_check_branch
    %49 = sbr.rel (0) target = $region61
  $region60: #{_lambda_.4} parent=0 // pred_region
    _
  $region61: #{_lambda_.4} parent=0 // pred_fallthru
    _
  %v50 = vld [vmem:[%s0] sm:$0x3]
  %v51 = vmul.f32 %v50, 0.00390625
  %v52 = vld [vmem:[%s1] sm:$0xff]
  %v53 = vld [vmem:[%s1 + $0x8] sm:$0xff]
  %v54 = vld [vmem:[%s1 + $0x10] sm:$0xff]
  %v55 = vld [vmem:[%s1 + $0x18] sm:$0xff]
  %v56 = vld [vmem:[%s2] sm:$0x1]
  %v58 = vlaneseq
  %v59 = vshrl.u32 %v58, 7
  %v60 = vsub.s32 0, %v59
  %v61 = vrot.slane %v56, %v60
  %vm63 = vcmask 261120
  %v65 = vsel %vm63, %v51, 0
  %67 = vmatprep.subr.mxu0 0.0
  %68 = vmatpush1.msra.mxu0 %v52
  %69 = vmatprep.subr.mxu0 0.0
  %70 = vmatpush1.msra.mxu0 %v53
  %71 = vmatprep.subr.mxu0 0.0
  %72 = vmatpush1.msra.mxu0 %v54
  %73 = vmatprep.subr.mxu0 0.0
  %74 = vmatpush1.msra.mxu0 %v55
  %75 = vmatprep.subr.mxu0 0.0
  %76 = vmatpush1.msra.mxu0 0.0
  %77 = vmatprep.subr.mxu0 0.0
  %78 = vmatpush1.msra.mxu0 0.0
  %79 = vmatprep.subr.mxu0 0.0
  %80 = vmatpush1.msra.mxu0 0.0
  %81 = vmatprep.subr.mxu0 0.0
  %82 = vmatpush1.msra.mxu0 0.0
  %83 = vmatprep.subr.mxu0 0.0
  %84 = vmatpush1.msra.mxu0 0.0
  %85 = vmatprep.subr.mxu0 0.0
  %86 = vmatpush1.msra.mxu0 0.0
  %87 = vmatprep.subr.mxu0 0.0
  %88 = vmatpush1.msra.mxu0 0.0
  %89 = vmatprep.subr.mxu0 0.0
  %90 = vmatpush1.msra.mxu0 0.0
  %91 = vmatprep.subr.mxu0 0.0
  %92 = vmatpush1.msra.mxu0 0.0
  %93 = vmatprep.subr.mxu0 0.0
  %94 = vmatpush1.msra.mxu0 0.0
  %95 = vmatprep.subr.mxu0 0.0
  %96 = vmatpush1.msra.mxu0 0.0
  %97 = vmatprep.subr.mxu0 0.0
  %98 = vmatpush1.msra.mxu0 0.0
  %99 = vmatprep.subr.mxu0 0.0
  %100 = vmatpush1.msra.mxu0 0.0
  %101 = vmatprep.subr.mxu0 0.0
  %102 = vmatpush1.msra.mxu0 0.0
  %103 = vmatprep.subr.mxu0 0.0
  %104 = vmatpush1.msra.mxu0 0.0
  %105 = vmatprep.subr.mxu0 0.0
  %106 = vmatpush1.msra.mxu0 0.0
  %107 = vmatprep.subr.mxu0 0.0
  %108 = vmatpush1.msra.mxu0 0.0
  %109 = vmatprep.subr.mxu0 0.0
  %110 = vmatpush1.msra.mxu0 0.0
  %111 = vmatprep.subr.mxu0 0.0
  %112 = vmatpush1.msra.mxu0 0.0
  %113 = vmatprep.subr.mxu0 0.0
  %114 = vmatpush1.msra.mxu0 0.0
  %115 = vmatprep.subr.mxu0 0.0
  %116 = vmatpush1.msra.mxu0 0.0
  %117 = vmatprep.subr.mxu0 0.0
  %118 = vmatpush1.msra.mxu0 0.0
  %119 = vmatprep.subr.mxu0 0.0
  %120 = vmatpush1.msra.mxu0 0.0
  %121 = vmatprep.subr.mxu0 0.0
  %122 = vmatpush1.msra.mxu0 0.0
  %123 = vmatprep.subr.mxu0 0.0
  %124 = vmatpush1.msra.mxu0 0.0
  %125 = vmatprep.subr.mxu0 0.0
  %126 = vmatpush1.msra.mxu0 0.0
  %127 = vmatprep.subr.mxu0 0.0
  %128 = vmatpush1.msra.mxu0 0.0
  %129 = vmatprep.subr.mxu0 0.0
  %130 = vmatpush1.msra.mxu0 0.0
  %131 = vmatprep.mubr.f32.mxu0 0.0
  %132 = vmatmul.mubr.f32.gmra.mrb[0].mxu0 %v65
  %v133 = vpop.f32.mrb[0].mxu0
  %v134 = vadd.f32 %v61, %v133
  %v135 = vpop.f32.mrb[0].mxu0
  %136 = vdwg.mxu0
  %vm137 = vcmask 9216
  %v138 = vsel %vm137, %v134, 0.0
  %v139 = vrot.slane %v138, 4
  %v140 = vadd.f32 %v138, %v139
  %v141 = vrot.slane %v140, 2
  %v142 = vadd.f32 %v140, %v141
  %v143 = vrot.slane %v142, 1
  %v144 = vadd.f32 %v142, %v143
  %v145 = vrcp.pop 2.0
  %v146 = vmul.f32 %v144, %v145
  %v147 = vsub.f32 %v134, %v146
  %v148 = vmul.f32 %v147, %v147
  %v149 = vsel %vm137, %v148, 0.0
  %v150 = vrot.slane %v149, 4
  %v151 = vadd.f32 %v149, %v150
  %v152 = vrot.slane %v151, 2
  %v153 = vadd.f32 %v151, %v152
  %v154 = vrot.slane %v153, 1
  %v155 = vadd.f32 %v153, %v154
  %v156 = vmul.f32 %v155, %v145
  %v157 = vadd.f32 %v156, 1e-05
  %v158 = vrsqrt.pop %v157
  %v159 = vmul.f32 %v147, %v158
  %v160 = vld [vmem:[%s3] sm:$0x1]
  %v162 = vlaneseq
  %v163 = vshrl.u32 %v162, 7
  %v164 = vsub.s32 0, %v163
  %v165 = vrot.slane %v160, %v164
  %v167 = vmul.f32 %v159, %v165
  %v168 = vld [vmem:[%s4] sm:$0x1]
  %v170 = vlaneseq
  %v171 = vshrl.u32 %v170, 7
  %v172 = vsub.s32 0, %v171
  %v173 = vrot.slane %v168, %v172
  %v175 = vadd.f32 %v167, %v173
  %v176 = vmax.f32 %v175, 0.0
  %v177 = vld [vmem:[%s5] sm:$0x3]
  %v178 = vld [vmem:[%s6] sm:$0x1]
  %v180 = vlaneseq
  %v181 = vshrl.u32 %v180, 7
  %v182 = vsub.s32 0, %v181
  %v183 = vrot.slane %v178, %v182
  %vm185 = vcmask 15360
  %v187 = vsel %vm185, %v176, 0
  %vm189 = vcmask 1041408
  %v191 = vsel %vm189, %v177, 0
  %193 = vmatprep.subr.mxu0 0.0
  %194 = vmatpush1.msra.mxu0 %v191
  %195 = vmatprep.subr.mxu0 0.0
  %196 = vmatpush1.msra.mxu0 0.0
  %197 = vmatprep.subr.mxu0 0.0
  %198 = vmatpush1.msra.mxu0 0.0
  %199 = vmatprep.subr.mxu0 0.0
  %200 = vmatpush1.msra.mxu0 0.0
  %201 = vmatprep.subr.mxu0 0.0
  %202 = vmatpush1.msra.mxu0 0.0
  %203 = vmatprep.subr.mxu0 0.0
  %204 = vmatpush1.msra.mxu0 0.0
  %205 = vmatprep.subr.mxu0 0.0
  %206 = vmatpush1.msra.mxu0 0.0
  %207 = vmatprep.subr.mxu0 0.0
  %208 = vmatpush1.msra.mxu0 0.0
  %209 = vmatprep.subr.mxu0 0.0
  %210 = vmatpush1.msra.mxu0 0.0
  %211 = vmatprep.subr.mxu0 0.0
  %212 = vmatpush1.msra.mxu0 0.0
  %213 = vmatprep.subr.mxu0 0.0
  %214 = vmatpush1.msra.mxu0 0.0
  %215 = vmatprep.subr.mxu0 0.0
  %216 = vmatpush1.msra.mxu0 0.0
  %217 = vmatprep.subr.mxu0 0.0
  %218 = vmatpush1.msra.mxu0 0.0
  %219 = vmatprep.subr.mxu0 0.0
  %220 = vmatpush1.msra.mxu0 0.0
  %221 = vmatprep.subr.mxu0 0.0
  %222 = vmatpush1.msra.mxu0 0.0
  %223 = vmatprep.subr.mxu0 0.0
  %224 = vmatpush1.msra.mxu0 0.0
  %225 = vmatprep.subr.mxu0 0.0
  %226 = vmatpush1.msra.mxu0 0.0
  %227 = vmatprep.subr.mxu0 0.0
  %228 = vmatpush1.msra.mxu0 0.0
  %229 = vmatprep.subr.mxu0 0.0
  %230 = vmatpush1.msra.mxu0 0.0
  %231 = vmatprep.subr.mxu0 0.0
  %232 = vmatpush1.msra.mxu0 0.0
  %233 = vmatprep.subr.mxu0 0.0
  %234 = vmatpush1.msra.mxu0 0.0
  %235 = vmatprep.subr.mxu0 0.0
  %236 = vmatpush1.msra.mxu0 0.0
  %237 = vmatprep.subr.mxu0 0.0
  %238 = vmatpush1.msra.mxu0 0.0
  %239 = vmatprep.subr.mxu0 0.0
  %240 = vmatpush1.msra.mxu0 0.0
  %241 = vmatprep.subr.mxu0 0.0
  %242 = vmatpush1.msra.mxu0 0.0
  %243 = vmatprep.subr.mxu0 0.0
  %244 = vmatpush1.msra.mxu0 0.0
  %245 = vmatprep.subr.mxu0 0.0
  %246 = vmatpush1.msra.mxu0 0.0
  %247 = vmatprep.subr.mxu0 0.0
  %248 = vmatpush1.msra.mxu0 0.0
  %249 = vmatprep.subr.mxu0 0.0
  %250 = vmatpush1.msra.mxu0 0.0
  %251 = vmatprep.subr.mxu0 0.0
  %252 = vmatpush1.msra.mxu0 0.0
  %253 = vmatprep.subr.mxu0 0.0
  %254 = vmatpush1.msra.mxu0 0.0
  %255 = vmatprep.subr.mxu0 0.0
  %256 = vmatpush1.msra.mxu0 0.0
  %257 = vmatprep.mubr.f32.mxu0 0.0
  %258 = vmatmul.mubr.f32.gmra.mrb[0].mxu0 %v187
  %v259 = vpop.f32.mrb[0].mxu0
  %v260 = vadd.f32 %v183, %v259
  %v261 = vpop.f32.mrb[0].mxu0
  %262 = vdwg.mxu0
  %v263 = vsel %vm137, %v260, 0.0
  %v264 = vrot.slane %v263, 4
  %v265 = vadd.f32 %v263, %v264
  %v266 = vrot.slane %v265, 2
  %v267 = vadd.f32 %v265, %v266
  %v268 = vrot.slane %v267, 1
  %v269 = vadd.f32 %v267, %v268
  %v270 = vmul.f32 %v269, %v145
  %v271 = vsub.f32 %v260, %v270
  %v272 = vmul.f32 %v271, %v271
  %v273 = vsel %vm137, %v272, 0.0
  %v274 = vrot.slane %v273, 4
  %v275 = vadd.f32 %v273, %v274
  %v276 = vrot.slane %v275, 2
  %v277 = vadd.f32 %v275, %v276
  %v278 = vrot.slane %v277, 1
  %v279 = vadd.f32 %v277, %v278
  %v280 = vmul.f32 %v279, %v145
  %v281 = vadd.f32 %v280, 1e-05
  %v282 = vrsqrt.pop %v281
  %v283 = vmul.f32 %v271, %v282
  %v284 = vld [vmem:[%s7] sm:$0x1]
  %v286 = vlaneseq
  %v287 = vshrl.u32 %v286, 7
  %v288 = vsub.s32 0, %v287
  %v289 = vrot.slane %v284, %v288
  %v291 = vmul.f32 %v283, %v289
  %v292 = vld [vmem:[%s8] sm:$0x1]
  %v294 = vlaneseq
  %v295 = vshrl.u32 %v294, 7
  %v296 = vsub.s32 0, %v295
  %v297 = vrot.slane %v292, %v296
  %v299 = vadd.f32 %v291, %v297
  %v300 = vmax.f32 %v299, 0.0
  %v301 = vld [vmem:[%s9] sm:$0x3]
  %v302 = vld [vmem:[%s10] sm:$0x1]
  %v304 = vlaneseq
  %v305 = vshrl.u32 %v304, 7
  %v306 = vsub.s32 0, %v305
  %v307 = vrot.slane %v302, %v306
  %v310 = vsel %vm185, %v300, 0
  %v313 = vsel %vm189, %v301, 0
  %315 = vmatprep.subr.mxu0 0.0
  %316 = vmatpush1.msra.mxu0 %v313
  %317 = vmatprep.subr.mxu0 0.0
  %318 = vmatpush1.msra.mxu0 0.0
  %319 = vmatprep.subr.mxu0 0.0
  %320 = vmatpush1.msra.mxu0 0.0
  %321 = vmatprep.subr.mxu0 0.0
  %322 = vmatpush1.msra.mxu0 0.0
  %323 = vmatprep.subr.mxu0 0.0
  %324 = vmatpush1.msra.mxu0 0.0
  %325 = vmatprep.subr.mxu0 0.0
  %326 = vmatpush1.msra.mxu0 0.0
  %327 = vmatprep.subr.mxu0 0.0
  %328 = vmatpush1.msra.mxu0 0.0
  %329 = vmatprep.subr.mxu0 0.0
  %330 = vmatpush1.msra.mxu0 0.0
  %331 = vmatprep.subr.mxu0 0.0
  %332 = vmatpush1.msra.mxu0 0.0
  %333 = vmatprep.subr.mxu0 0.0
  %334 = vmatpush1.msra.mxu0 0.0
  %335 = vmatprep.subr.mxu0 0.0
  %336 = vmatpush1.msra.mxu0 0.0
  %337 = vmatprep.subr.mxu0 0.0
  %338 = vmatpush1.msra.mxu0 0.0
  %339 = vmatprep.subr.mxu0 0.0
  %340 = vmatpush1.msra.mxu0 0.0
  %341 = vmatprep.subr.mxu0 0.0
  %342 = vmatpush1.msra.mxu0 0.0
  %343 = vmatprep.subr.mxu0 0.0
  %344 = vmatpush1.msra.mxu0 0.0
  %345 = vmatprep.subr.mxu0 0.0
  %346 = vmatpush1.msra.mxu0 0.0
  %347 = vmatprep.subr.mxu0 0.0
  %348 = vmatpush1.msra.mxu0 0.0
  %349 = vmatprep.subr.mxu0 0.0
  %350 = vmatpush1.msra.mxu0 0.0
  %351 = vmatprep.subr.mxu0 0.0
  %352 = vmatpush1.msra.mxu0 0.0
  %353 = vmatprep.subr.mxu0 0.0
  %354 = vmatpush1.msra.mxu0 0.0
  %355 = vmatprep.subr.mxu0 0.0
  %356 = vmatpush1.msra.mxu0 0.0
  %357 = vmatprep.subr.mxu0 0.0
  %358 = vmatpush1.msra.mxu0 0.0
  %359 = vmatprep.subr.mxu0 0.0
  %360 = vmatpush1.msra.mxu0 0.0
  %361 = vmatprep.subr.mxu0 0.0
  %362 = vmatpush1.msra.mxu0 0.0
  %363 = vmatprep.subr.mxu0 0.0
  %364 = vmatpush1.msra.mxu0 0.0
  %365 = vmatprep.subr.mxu0 0.0
  %366 = vmatpush1.msra.mxu0 0.0
  %367 = vmatprep.subr.mxu0 0.0
  %368 = vmatpush1.msra.mxu0 0.0
  %369 = vmatprep.subr.mxu0 0.0
  %370 = vmatpush1.msra.mxu0 0.0
  %371 = vmatprep.subr.mxu0 0.0
  %372 = vmatpush1.msra.mxu0 0.0
  %373 = vmatprep.subr.mxu0 0.0
  %374 = vmatpush1.msra.mxu0 0.0
  %375 = vmatprep.subr.mxu0 0.0
  %376 = vmatpush1.msra.mxu0 0.0
  %377 = vmatprep.subr.mxu0 0.0
  %378 = vmatpush1.msra.mxu0 0.0
  %379 = vmatprep.mubr.f32.mxu0 0.0
  %380 = vmatmul.mubr.f32.gmra.mrb[0].mxu0 %v310
  %v381 = vpop.f32.mrb[0].mxu0
  %v382 = vadd.f32 %v307, %v381
  %v383 = vpop.f32.mrb[0].mxu0
  %384 = vdwg.mxu0
  %v385 = vsel %vm137, %v382, 0.0
  %v386 = vrot.slane %v385, 4
  %v387 = vadd.f32 %v385, %v386
  %v388 = vrot.slane %v387, 2
  %v389 = vadd.f32 %v387, %v388
  %v390 = vrot.slane %v389, 1
  %v391 = vadd.f32 %v389, %v390
  %v392 = vmul.f32 %v391, %v145
  %v393 = vsub.f32 %v382, %v392
  %v394 = vmul.f32 %v393, %v393
  %v395 = vsel %vm137, %v394, 0.0
  %v396 = vrot.slane %v395, 4
  %v397 = vadd.f32 %v395, %v396
  %v398 = vrot.slane %v397, 2
  %v399 = vadd.f32 %v397, %v398
  %v400 = vrot.slane %v399, 1
  %v401 = vadd.f32 %v399, %v400
  %v402 = vmul.f32 %v401, %v145
  %v403 = vadd.f32 %v402, 1e-05
  %v404 = vrsqrt.pop %v403
  %v405 = vmul.f32 %v393, %v404
  %v406 = vld [vmem:[%s11] sm:$0x1]
  %v408 = vlaneseq
  %v409 = vshrl.u32 %v408, 7
  %v410 = vsub.s32 0, %v409
  %v411 = vrot.slane %v406, %v410
  %v413 = vmul.f32 %v405, %v411
  %v414 = vld [vmem:[%s12] sm:$0x1]
  %v416 = vlaneseq
  %v417 = vshrl.u32 %v416, 7
  %v418 = vsub.s32 0, %v417
  %v419 = vrot.slane %v414, %v418
  %v421 = vadd.f32 %v413, %v419
  %v422 = vmax.f32 %v421, 0.0
  %v423 = vld [vmem:[%s13] sm:$0x3]
  %v424 = vld [vmem:[%s14] sm:$0x1]
  %v426 = vlaneseq
  %v427 = vshrl.u32 %v426, 7
  %v428 = vsub.s32 0, %v427
  %v429 = vrot.slane %v424, %v428
  %v432 = vsel %vm185, %v422, 0
  %v435 = vsel %vm189, %v423, 0
  %437 = vmatprep.subr.mxu0 0.0
  %438 = vmatpush1.msra.mxu0 %v435
  %439 = vmatprep.subr.mxu0 0.0
  %440 = vmatpush1.msra.mxu0 0.0
  %441 = vmatprep.subr.mxu0 0.0
  %442 = vmatpush1.msra.mxu0 0.0
  %443 = vmatprep.subr.mxu0 0.0
  %444 = vmatpush1.msra.mxu0 0.0
  %445 = vmatprep.subr.mxu0 0.0
  %446 = vmatpush1.msra.mxu0 0.0
  %447 = vmatprep.subr.mxu0 0.0
  %448 = vmatpush1.msra.mxu0 0.0
  %449 = vmatprep.subr.mxu0 0.0
  %450 = vmatpush1.msra.mxu0 0.0
  %451 = vmatprep.subr.mxu0 0.0
  %452 = vmatpush1.msra.mxu0 0.0
  %453 = vmatprep.subr.mxu0 0.0
  %454 = vmatpush1.msra.mxu0 0.0
  %455 = vmatprep.subr.mxu0 0.0
  %456 = vmatpush1.msra.mxu0 0.0
  %457 = vmatprep.subr.mxu0 0.0
  %458 = vmatpush1.msra.mxu0 0.0
  %459 = vmatprep.subr.mxu0 0.0
  %460 = vmatpush1.msra.mxu0 0.0
  %461 = vmatprep.subr.mxu0 0.0
  %462 = vmatpush1.msra.mxu0 0.0
  %463 = vmatprep.subr.mxu0 0.0
  %464 = vmatpush1.msra.mxu0 0.0
  %465 = vmatprep.subr.mxu0 0.0
  %466 = vmatpush1.msra.mxu0 0.0
  %467 = vmatprep.subr.mxu0 0.0
  %468 = vmatpush1.msra.mxu0 0.0
  %469 = vmatprep.subr.mxu0 0.0
  %470 = vmatpush1.msra.mxu0 0.0
  %471 = vmatprep.subr.mxu0 0.0
  %472 = vmatpush1.msra.mxu0 0.0
  %473 = vmatprep.subr.mxu0 0.0
  %474 = vmatpush1.msra.mxu0 0.0
  %475 = vmatprep.subr.mxu0 0.0
  %476 = vmatpush1.msra.mxu0 0.0
  %477 = vmatprep.subr.mxu0 0.0
  %478 = vmatpush1.msra.mxu0 0.0
  %479 = vmatprep.subr.mxu0 0.0
  %480 = vmatpush1.msra.mxu0 0.0
  %481 = vmatprep.subr.mxu0 0.0
  %482 = vmatpush1.msra.mxu0 0.0
  %483 = vmatprep.subr.mxu0 0.0
  %484 = vmatpush1.msra.mxu0 0.0
  %485 = vmatprep.subr.mxu0 0.0
  %486 = vmatpush1.msra.mxu0 0.0
  %487 = vmatprep.subr.mxu0 0.0
  %488 = vmatpush1.msra.mxu0 0.0
  %489 = vmatprep.subr.mxu0 0.0
  %490 = vmatpush1.msra.mxu0 0.0
  %491 = vmatprep.subr.mxu0 0.0
  %492 = vmatpush1.msra.mxu0 0.0
  %493 = vmatprep.subr.mxu0 0.0
  %494 = vmatpush1.msra.mxu0 0.0
  %495 = vmatprep.subr.mxu0 0.0
  %496 = vmatpush1.msra.mxu0 0.0
  %497 = vmatprep.subr.mxu0 0.0
  %498 = vmatpush1.msra.mxu0 0.0
  %499 = vmatprep.subr.mxu0 0.0
  %500 = vmatpush1.msra.mxu0 0.0
  %501 = vmatprep.mubr.f32.mxu0 0.0
  %502 = vmatmul.mubr.f32.gmra.mrb[0].mxu0 %v432
  %v503 = vpop.f32.mrb[0].mxu0
  %v504 = vadd.f32 %v429, %v503
  %v505 = vpop.f32.mrb[0].mxu0
  %506 = vdwg.mxu0
  %vm507 = vcmask 254976
  %508 = vst.msk [vmem:[%s15] sm:$0x3] %vm507, %v504
  // Predicated region
  $region62: #{_lambda_.4} parent=0 // pred_check
    _
  $region63: #{_lambda_.4} parent=0 // pred_check_branch
    %510 = sbr.rel (0) target = $region65
  $region64: #{_lambda_.4} parent=0 // pred_region
    _
  $region65: #{_lambda_.4} parent=0 // pred_fallthru
    _
  // Predicated region
  $region66: #{_lambda_.4} parent=0 // pred_check
    _
  $region67: #{_lambda_.4} parent=0 // pred_check_branch
    %512 = sbr.rel (0) target = $region69
  $region68: #{_lambda_.4} parent=0 // pred_region
    _
  $region69: #{_lambda_.4} parent=0 // pred_fallthru
    _

</llo_original>
